<compile_context>
chip_gen: v7x
topology: tpu7x:2x2x1
jax: 0.10.0
libtpu: 0.0.40
codegen_flags: <defaults>
</compile_context>

<pallas_src>
import math

import jax
import jax.numpy as jnp
from jax.experimental import pallas as pl
from jax.experimental.pallas import tpu as pltpu


def layer_scale_kernel(x_ref, g_ref, o_ref):
    # (tm, tl) tile * (1, tl) gamma row -> broadcast multiply on the VPU,
    # in the native dtype of x (gamma pre-cast in the wrapper).
    o_ref[...] = x_ref[...] * g_ref[...]


def _vmem_budget():
    """Generation-aware scoped-VMEM limit and per-buffer tile target (bytes)."""
    cap = 64 * 1024 * 1024  # conservative default: v7x has the smallest VMEM
    try:
        info = pltpu.get_tpu_info()
        cap = int(getattr(info, "vmem_capacity_bytes", cap)) or cap
    except Exception:
        pass
    # Scoped limit: <= 48 MiB and <= 3/4 of physical VMEM.
    vmem_limit = int(min(48 * 1024 * 1024, (cap * 3) // 4))
    # ~4 double-buffered tiles (x in + out) plus gamma/slack must fit.
    target = int(max(4 * 1024 * 1024, min(12 * 1024 * 1024, vmem_limit // 5)))
    return vmem_limit, target


def _round_down(v, m):
    return (v // m) * m


def _choose_tiles(rows, lane, itemsize, target_bytes):
    """Pick (row_tile, lane_tile): sublane/128-aligned, ~target bytes/buffer."""
    sublane = {4: 8, 2: 16, 1: 32}.get(itemsize, 8)

    # Lane tile: full lane when it fits; otherwise split in 128-multiples
    # (only relevant for very wide D). Non-128-multiple lanes must stay whole
    # (block dim == full extent is the only legal option there).
    if lane <= 128 or lane % 128 != 0 or sublane * lane * itemsize <= target_bytes:
        tl = lane
    else:
        tl = max(128, _round_down(target_bytes // (sublane * itemsize), 128))
        tl = min(tl, lane)

    # Row tile: ~target bytes per buffer, sublane aligned.
    if rows <= sublane:
        return rows, tl
    tm = max(sublane, _round_down(target_bytes // max(1, tl * itemsize), sublane))
    tm = min(tm, rows)
    # Guarantee >= 2 reasonably balanced steps so both v7x TensorCores get work.
    if tm >= rows and rows >= 2 * sublane:
        tm = max(sublane, _round_down(rows // 2, sublane))
    return tm, tl


def layer_scale(x, gamma):
    """LayerScale forward: x * gamma with gamma broadcast over the last axis."""
    orig_shape = x.shape
    D = orig_shape[-1]
    assert gamma.shape == (D,)
    total = x.size

    # Native-dtype math: matches the PyTorch module when the parameter shares
    # x's dtype (the common case; keeps bf16 traffic off the VALU/ld-st slots).
    g = gamma.astype(x.dtype)

    # Lane-dense layout: fold tokens into the lane axis so output stores are
    # unmasked, 128-lane-aligned vst's whenever possible.
    if D % 128 == 0:
        lane = D
    else:
        lane = (D * 128) // math.gcd(D, 128)  # lcm(D, 128)
        if lane != D and total % lane == 0:
            g = jnp.tile(g, lane // D)  # period D divides lane -> exact
        else:
            lane = D  # lane-sparse fallback (still correct)

    rows = total // lane
    x2 = x.reshape(rows, lane)
    g2 = g.reshape(1, lane)

    vmem_limit, target_bytes = _vmem_budget()
    tm, tl = _choose_tiles(rows, lane, x.dtype.itemsize, target_bytes)
    grid = (pl.cdiv(rows, tm), pl.cdiv(lane, tl))

    out2 = pl.pallas_call(
        layer_scale_kernel,
        out_shape=jax.ShapeDtypeStruct((rows, lane), x.dtype),
        grid_spec=pltpu.PrefetchScalarGridSpec(
            num_scalar_prefetch=0,
            grid=grid,
            in_specs=[
                pl.BlockSpec((tm, tl), lambda i, j: (i, j)),
                pl.BlockSpec((1, tl), lambda i, j: (0, j)),  # gamma stays resident per lane-tile
            ],
            out_specs=pl.BlockSpec((tm, tl), lambda i, j: (i, j)),
        ),
        compiler_params=pltpu.CompilerParams(
            dimension_semantics=("parallel", "parallel"),
            vmem_limit_bytes=vmem_limit,
        ),
    )(x2, g2)
    return out2.reshape(orig_shape)


if __name__ == "__main__":
    init_values = 1e-05
    key = jax.random.PRNGKey(0)

    # Primary check: the module's natural small shape (B, N, D) with D=32.
    B, N, D = 2, 8, 32
    x = jax.random.normal(key, (B, N, D), dtype=jnp.float32)
    gamma = init_values * jnp.ones((D,), dtype=jnp.float32)  # as in __init__
    out = jax.block_until_ready(layer_scale(x, gamma))
    ref = x * gamma
    assert out.shape == x.shape and out.dtype == x.dtype
    assert jnp.allclose(out, ref, atol=1e-7, rtol=1e-6), "mismatch vs reference (D=32)"

    # Secondary check: exercises the lcm(D,128) lane-folding path (D=96).
    D2 = 96
    x2 = jax.random.normal(jax.random.PRNGKey(1), (B, N, D2), dtype=jnp.float32)
    gamma2 = init_values * jnp.ones((D2,), dtype=jnp.float32)
    out2 = jax.block_until_ready(layer_scale(x2, gamma2))
    ref2 = x2 * gamma2
    assert jnp.allclose(out2, ref2, atol=1e-7, rtol=1e-6), "mismatch vs reference (D=96)"

    print("KERNEL_OK")
</pallas_src>

<mosaic_0001>
module attributes {stable_mosaic.version = 11 : i64} {
  func.func @layer_scale_kernel(%arg0: i32, %arg1: i32, %arg2: memref<4x128xf32, #tpu.memory_space<vmem>>, %arg3: memref<1x128xf32, #tpu.memory_space<vmem>>, %arg4: memref<4x128xf32, #tpu.memory_space<vmem>>) attributes {dimension_semantics = [#tpu.dimension_semantics<parallel>, #tpu.dimension_semantics<parallel>], iteration_bounds = array<i64: 1, 1>, scalar_prefetch = 0 : i64, scratch_operands = 0 : i64, tpu.core_type = #tpu.core_type<tc>, window_params = [{transform_indices = @transform_0, window_bounds = array<i64: 4, 128>}, {transform_indices = @transform_1, window_bounds = array<i64: 1, 128>}, {transform_indices = @transform_2, window_bounds = array<i64: 4, 128>}]} {
    %c0 = arith.constant 0 : index
    %c0_0 = arith.constant 0 : index
    %0 = vector.load %arg2[%c0, %c0_0] : memref<4x128xf32, #tpu.memory_space<vmem>>, vector<4x128xf32>
    %c0_1 = arith.constant 0 : index
    %c0_2 = arith.constant 0 : index
    %1 = vector.load %arg3[%c0_1, %c0_2] : memref<1x128xf32, #tpu.memory_space<vmem>>, vector<1x128xf32>
    %2 = vector.broadcast %1 : vector<1x128xf32> to vector<4x128xf32>
    %3 = arith.mulf %0, %2 : vector<4x128xf32>
    %c0_3 = arith.constant 0 : index
    %c0_4 = arith.constant 0 : index
    %4 = vector.load %arg4[%c0_3, %c0_4] : memref<4x128xf32, #tpu.memory_space<vmem>>, vector<4x128xf32>
    tpu.vector_store %arg4[%c0_3, %c0_4], %3 {strides = array<i32>} : memref<4x128xf32, #tpu.memory_space<vmem>>, vector<4x128xf32>,
    return
  }
  func.func @transform_0(%arg0: i32, %arg1: i32) -> (i32, i32) {
    %c0_i32 = arith.constant 0 : i32
    return %arg0, %arg1 : i32, i32
  }
  func.func @transform_1(%arg0: i32, %arg1: i32) -> (i32, i32) {
    %c0_i32 = arith.constant 0 : i32
    %c0_i32_0 = arith.constant 0 : i32
    return %c0_i32, %arg1 : i32, i32
  }
  func.func @transform_2(%arg0: i32, %arg1: i32) -> (i32, i32) {
    %c0_i32 = arith.constant 0 : i32
    return %arg0, %arg1 : i32, i32
  }
}

</mosaic_0001>

<llo_original>
// kernel: tpu_custom_call.1
$region0: #{tpu_custom_call.1}
  #allocation0 [shape = 'u32[]', space=smem, size = 0x4, offset = 0x4, fixed_abs, tag = 'smem constant byte address 0x4 - core index']
  #allocation1 [shape = 'u32[144,128]{1,0:T(1,128)}', space=vmem, size = 0x12000, scoped, tag = 'internal scratch']
  %s0 = inlined_call_operand.hbm [shape: f32[4,128], index: 0, kind: input, shape index: {}]
  %s1 = inlined_call_operand.vmem [shape: f32[1,128], index: 1, kind: input, shape index: {}]
  %s2 = inlined_call_operand.hbm [shape: f32[4,128], index: 2, kind: output, shape index: {}]
  %s3 = sld [smem:[#allocation0]]
  $region22: #{tpu_custom_call.1} parent=0
    _
  %s5 = ssub.s32 1, %s3
  %s6 = scalar_select 0, %s5, %s3
  $region1: #{tpu_custom_call.1} parent=0
    #allocation2 [shape = 'u8[2048]{0}', space=vmem, size = 0x800, scoped, tag = 'input window, operand 0, single buffered']
    #allocation3 [shape = 's32[1]{0}', space=sflag, size = 0x4, scoped, tag = 'scoped memory for tpu_custom_call.1']
    #allocation4 [shape = 's32[1]{0}', space=sflag, size = 0x4, scoped, tag = 'scoped memory for tpu_custom_call.1']
    #allocation5 [shape = 'u8[2048]{0}', space=vmem, size = 0x800, scoped, tag = 'output window, operand 0, single buffered']
    %7 = vsyncpa [#allocation3], 0
    %8 = vsyncpa [#allocation4], 0
    // Predicated region
    $region2: #{tpu_custom_call.1} parent=1 // pred_check
      _
    $region3: #{tpu_custom_call.1} parent=1 // pred_check_branch
      %10 = sbr.rel (0) target = $region5
    $region4: #{tpu_custom_call.1} parent=1 // pred_region
      %s12 = ssub.s32 64, 64
      %13 = vsyncadd [#allocation3], %s12
      %s15 = sshll.u32 [#allocation2], 4
      %s16 = int_to_ptr.vmem [resolvable:$true] %s15
      %18 = dma.hbm_to_vmem [thread:$0]  %s0, 64, %s16, [#allocation3]
    $region5: #{tpu_custom_call.1} parent=1 // pred_fallthru
      _
    // Predicated region
    $region6: #{tpu_custom_call.1} parent=1 // pred_check
      _
    $region7: #{tpu_custom_call.1} parent=1 // pred_check_branch
      %20 = sbr.rel (0) target = $region9
    $region8: #{tpu_custom_call.1} parent=1 // pred_region
      _
    $region9: #{tpu_custom_call.1} parent=1 // pred_fallthru
      _
    // Predicated region
    $region10: #{tpu_custom_call.1} parent=1 // pred_check
      _
    $region11: #{tpu_custom_call.1} parent=1 // pred_check_branch
      %22 = sbr.rel (0) target = $region13
    $region12: #{tpu_custom_call.1} parent=1 // pred_region
      %23 = dma.done [#allocation3], 64
    $region13: #{tpu_custom_call.1} parent=1 // pred_fallthru
      _
    %v24 = vld [vmem:[#allocation2] sm:$0xf]
    %v25 = vld [vmem:[%s1] sm:$0x1]
    %v27 = vlaneseq
    %v28 = vshrl.u32 %v27, 7
    %v29 = vsub.s32 0, %v28
    %v30 = vrot.slane %v25, %v29
    %v32 = vmul.f32 %v24, %v30
    %33 = vst [vmem:[#allocation5] sm:$0xf] %v32
    // Predicated region
    $region14: #{tpu_custom_call.1} parent=1 // pred_check
      _
    $region15: #{tpu_custom_call.1} parent=1 // pred_check_branch
      %35 = sbr.rel (0) target = $region17
    $region16: #{tpu_custom_call.1} parent=1 // pred_region
      %s37 = ssub.s32 64, 64
      %38 = vsyncadd [#allocation4], %s37
      %s40 = sshll.u32 [#allocation5], 4
      %s41 = int_to_ptr.vmem [resolvable:$true] %s40
      %43 = dma.vmem_to_hbm [thread:$0]  %s41, 64, %s2, [#allocation4]
    $region17: #{tpu_custom_call.1} parent=1 // pred_fallthru
      _
    // Predicated region
    $region18: #{tpu_custom_call.1} parent=1 // pred_check
      _
    $region19: #{tpu_custom_call.1} parent=1 // pred_check_branch
      %45 = sbr.rel (0) target = $region21
    $region20: #{tpu_custom_call.1} parent=1 // pred_region
      %46 = dma.done [#allocation4], 64
    $region21: #{tpu_custom_call.1} parent=1 // pred_fallthru
      _
    %47 = vsyncpa [#allocation3], 1
    %48 = vsyncpa [#allocation4], 1

</llo_original>
